<compile_context>
chip_gen: v7x
topology: tpu7x:2x2x1
jax: 0.10.0
libtpu: 0.0.40
codegen_flags: <defaults>
</compile_context>

<pallas_src>
import functools

import jax
import jax.numpy as jnp
from jax.experimental import pallas as pl
from jax.experimental.pallas import tpu as pltpu


# ~2 MiB of f32-equivalent payload per pipelined buffer.
# TODO(synk): on v7x (3.2 TB/s HBM) this could be raised to ~4 MiB together with
# pltpu.CompilerParams(vmem_limit_bytes=...) to shave per-grid-step overhead.
_BLOCK_ELEMS_F32EQ = 512 * 1024

_GAP_LANE_TILE = 8 * 1024     # L-tile for the tiled pass-1 reduction (multiple of 128)
_SCALE_LANE_TILE = 2 * 1024   # L-tile for the pass-2 elementwise scale (multiple of 128)


def _sublane(dtype) -> int:
    """Native sublane packing: 8 for f32, 16 for bf16/f16, 32 for int8/fp8."""
    return max(8, 32 // jnp.dtype(dtype).itemsize)


def _row_tile(n_rows: int, lane_elems: int, dtype) -> int:
    """Rows per block: full extent when small, else a multiple of the dtype's
    native sublane tile, sized to ~_BLOCK_ELEMS_F32EQ f32-equivalent elements."""
    sub = _sublane(dtype)
    if n_rows <= sub:
        return n_rows
    max_rows = max(sub, _BLOCK_ELEMS_F32EQ // max(lane_elems, 1))
    t = (min(n_rows, max_rows) // sub) * sub
    if t >= n_rows:
        return n_rows
    return max(sub, t)


# --------------------------- fused single-pass path ---------------------------

def _fused_kernel(w_ref, y_ref, o_ref, *, inv_len):
    # w_ref: (3,) f32 in SMEM.  y_ref / o_ref: (TB, C, L) blocks (full C, full L).
    y = y_ref[...]
    gap = jnp.sum(y.astype(jnp.float32), axis=-1, keepdims=True) * inv_len  # (TB, C, 1)

    c = y.shape[1]
    if c > 1:
        zero = jnp.zeros((y.shape[0], 1, 1), jnp.float32)
        g_prev = jnp.concatenate([zero, gap[:, :-1, :]], axis=1)   # gap[c-1], zero at c=0
        g_next = jnp.concatenate([gap[:, 1:, :], zero], axis=1)    # gap[c+1], zero at c=C-1
    else:
        g_prev = jnp.zeros_like(gap)
        g_next = jnp.zeros_like(gap)

    a = w_ref[0] * g_prev + w_ref[1] * gap + w_ref[2] * g_next
    scale = 1.0 + jax.nn.sigmoid(a)                                 # (TB, C, 1) f32
    # Multiply in f32; cast only at the store (matches reference to ~1 ulp).
    o_ref[...] = (y * scale).astype(o_ref.dtype)


def _am_fused(y, w):
    B, C, L = y.shape
    # Pack several batches per block when C*L is small; cap at the byte budget.
    tb = max(1, min(B, _BLOCK_ELEMS_F32EQ // max(C * L, 1)))
    kernel = functools.partial(_fused_kernel, inv_len=1.0 / float(L))
    return pl.pallas_call(
        kernel,
        out_shape=jax.ShapeDtypeStruct((B, C, L), y.dtype),
        grid=(pl.cdiv(B, tb),),
        in_specs=[
            pl.BlockSpec(memory_space=pltpu.MemorySpace.SMEM),      # conv taps w (3,)
            pl.BlockSpec((tb, C, L), lambda b: (b, 0, 0)),
        ],
        out_specs=pl.BlockSpec((tb, C, L), lambda b: (b, 0, 0)),
        compiler_params=pltpu.CompilerParams(dimension_semantics=("parallel",)),
        cost_estimate=pl.CostEstimate(
            flops=int(3 * B * C * L),
            transcendentals=int(B * C),
            bytes_accessed=int(2 * B * C * L * y.dtype.itemsize + 12)),
    )(w, y)


# --------------------------- pass 1: row means over L ---------------------------

def _gap_full_kernel(y_ref, gap_ref, *, inv_len):
    # y_ref: (TR, L) block holding whole rows; gap_ref: (TR, 1) f32 row means.
    s = jnp.sum(y_ref[...], axis=-1, keepdims=True, dtype=jnp.float32)
    gap_ref[...] = s * inv_len


def _gap_tiled_kernel(y_ref, gap_ref, acc_ref, *, inv_len, tl, total_l, ragged):
    # y_ref: (TR, TL) tile; gap_ref: (TR, 1) f32; acc_ref: (TR, 128) f32 scratch.
    k = pl.program_id(1)

    @pl.when(k == 0)
    def _init():
        acc_ref[...] = jnp.zeros_like(acc_ref)

    y = y_ref[...]
    if ragged:
        # Mask the padded tail of the last L-tile (OOB lanes hold garbage).
        col = k * tl + jax.lax.broadcasted_iota(jnp.int32, (1, tl), 1)
        y = jnp.where(col < total_l, y, jnp.array(0, y.dtype))

    # Fold the tile's 128-lane groups into the accumulator with pure VPU adds;
    # the single cross-lane (XLU) reduce runs once per row block, in the final step.
    part = y[:, 0:128].astype(jnp.float32)
    for g in range(1, tl // 128):
        part = part + y[:, g * 128:(g + 1) * 128].astype(jnp.float32)
    acc_ref[...] += part

    @pl.when(k == pl.num_programs(1) - 1)
    def _finalize():
        gap_ref[...] = jnp.sum(acc_ref[...], axis=-1, keepdims=True) * inv_len


def _row_mean(y2d):
    """y2d: (R, L) -> (R, 1) f32 row means via a Pallas reduction kernel."""
    R, L = y2d.shape
    sub = _sublane(y2d.dtype)
    inv_len = 1.0 / float(L)
    bytes_acc = int(R * L * y2d.dtype.itemsize + R * 4)

    if L * sub <= _BLOCK_ELEMS_F32EQ:
        # Whole rows fit comfortably in a block: single grid axis over rows.
        tr = _row_tile(R, L, y2d.dtype)
        return pl.pallas_call(
            functools.partial(_gap_full_kernel, inv_len=inv_len),
            out_shape=jax.ShapeDtypeStruct((R, 1), jnp.float32),
            grid=(pl.cdiv(R, tr),),
            in_specs=[pl.BlockSpec((tr, L), lambda i: (i, 0))],
            out_specs=pl.BlockSpec((tr, 1), lambda i: (i, 0)),
            compiler_params=pltpu.CompilerParams(dimension_semantics=("parallel",)),
            cost_estimate=pl.CostEstimate(flops=int(R * L), transcendentals=0,
                                          bytes_accessed=bytes_acc),
        )(y2d)

    # Large L: tile the reduction axis (last grid axis, "arbitrary"); VMEM stays
    # bounded for any L.  tl divides 128 and L > tl is guaranteed on this path.
    tl = _GAP_LANE_TILE
    tr = _row_tile(R, tl, y2d.dtype)
    kernel = functools.partial(_gap_tiled_kernel, inv_len=inv_len, tl=tl,
                               total_l=L, ragged=(L % tl) != 0)
    return pl.pallas_call(
        kernel,
        out_shape=jax.ShapeDtypeStruct((R, 1), jnp.float32),
        grid=(pl.cdiv(R, tr), pl.cdiv(L, tl)),
        in_specs=[pl.BlockSpec((tr, tl), lambda i, k: (i, k))],
        out_specs=pl.BlockSpec((tr, 1), lambda i, k: (i, 0)),
        scratch_shapes=[pltpu.VMEM((tr, 128), jnp.float32)],
        compiler_params=pltpu.CompilerParams(
            dimension_semantics=("parallel", "arbitrary")),
        cost_estimate=pl.CostEstimate(flops=int(R * L), transcendentals=0,
                                      bytes_accessed=bytes_acc),
    )(y2d)


# ------------------------ pass 2: elementwise scale over Y ------------------------

def _scale_kernel(s_ref, y_ref, o_ref):
    # s_ref: (TR, 1) f32 per-row scale (1 + sigmoid(conv)); y_ref / o_ref: (TR, TL).
    # Multiply in f32; cast only at the output store.
    o_ref[...] = (y_ref[...] * s_ref[...]).astype(o_ref.dtype)


def _apply_scale(y2d, scale2d):
    R, L = y2d.shape
    tl = L if L <= _SCALE_LANE_TILE else _SCALE_LANE_TILE   # lane-dense output blocks
    tr = _row_tile(R, tl, y2d.dtype)
    return pl.pallas_call(
        _scale_kernel,
        out_shape=jax.ShapeDtypeStruct((R, L), y2d.dtype),
        grid=(pl.cdiv(R, tr), pl.cdiv(L, tl)),
        in_specs=[
            pl.BlockSpec((tr, 1), lambda i, j: (i, 0)),     # per-row scale
            pl.BlockSpec((tr, tl), lambda i, j: (i, j)),    # data tile
        ],
        out_specs=pl.BlockSpec((tr, tl), lambda i, j: (i, j)),
        compiler_params=pltpu.CompilerParams(
            dimension_semantics=("parallel", "parallel")),
        cost_estimate=pl.CostEstimate(
            flops=int(R * L), transcendentals=0,
            bytes_accessed=int(2 * R * L * y2d.dtype.itemsize + R * 4)),
    )(scale2d, y2d)


# ----------------------------------- wrappers -----------------------------------

def _atten_scale(gap, w):
    """gap: (B, C) f32 means, w: (3,) f32 -> (B, C) f32 scale = 1 + sigmoid(conv3)."""
    g = jnp.pad(gap, ((0, 0), (1, 1)))                       # zero-padded 3-tap conv along C
    a = w[0] * g[:, :-2] + w[1] * g[:, 1:-1] + w[2] * g[:, 2:]
    return 1.0 + jax.nn.sigmoid(a)


def _am_two_pass(y, w):
    B, C, L = y.shape
    y2d = y.reshape(B * C, L)                                 # lane-dense flattened layout
    gap = _row_mean(y2d).reshape(B, C)                        # pass 1 (Pallas reduction)
    scale = _atten_scale(gap, w)                              # tiny (B, C) glue in plain JAX
    out2d = _apply_scale(y2d, scale.reshape(B * C, 1))        # pass 2 (Pallas elementwise)
    return out2d.reshape(B, C, L)


def am_forward(y, w):
    """y: (B, C, L); w: Conv1d(1, 1, 3, bias=False) weight (any shape with 3 elems).

    Returns (1 + sigmoid(conv3(mean_L(y)))) * y  ==  atten * y + y.
    """
    B, C, L = y.shape
    w = jnp.asarray(w, jnp.float32).reshape(3)
    if C * L <= _BLOCK_ELEMS_F32EQ:
        try:
            # Fused single-pass kernel: ~2x HBM traffic instead of ~3x.
            return _am_fused(y, w)
        except Exception:
            # Conservative fallback (e.g. if a lowering path is unavailable on
            # this jaxlib); the two-pass kernels below are always supported.
            pass
    return _am_two_pass(y, w)


def am_reference(y, w):
    """Pure-JAX reference for correctness checking."""
    w = jnp.asarray(w, jnp.float32).reshape(3)
    y_gap = jnp.mean(y, axis=-1)
    pad = jnp.pad(y_gap, ((0, 0), (1, 1)))
    a = w[0] * pad[:, :-2] + w[1] * pad[:, 1:-1] + w[2] * pad[:, 2:]
    atten = jax.nn.sigmoid(a)
    return atten[:, :, None] * y + y


if __name__ == "__main__":
    key = jax.random.PRNGKey(0)
    ky, kw = jax.random.split(key)

    B, C, L = 2, 4, 16
    y = jax.random.normal(ky, (B, C, L), dtype=jnp.float32)
    # Conv1d(1, 1, 3, bias=False) weight, shape (1, 1, 3) in torch -> flattened (3,)
    w = jax.random.normal(kw, (3,), dtype=jnp.float32) * 0.5

    ref = am_reference(y, w)

    out = jax.block_until_ready(am_forward(y, w))             # fused path
    assert out.shape == (B, C, L)
    assert jnp.allclose(out, ref, atol=1e-5, rtol=1e-5), "fused path mismatch"

    out2 = jax.block_until_ready(_am_two_pass(y, w.astype(jnp.float32)))  # two-pass path
    assert jnp.allclose(out2, ref, atol=1e-5, rtol=1e-5), "two-pass path mismatch"

    print("KERNEL_OK")
</pallas_src>

<mosaic_0001>
module attributes {stable_mosaic.version = 11 : i64} {
  func.func @_fused_kernel(%arg0: i32, %arg1: memref<3xf32, #tpu.memory_space<smem>>, %arg2: memref<2x4x16xf32, #tpu.memory_space<vmem>>, %arg3: memref<2x4x16xf32, #tpu.memory_space<vmem>>) attributes {dimension_semantics = [#tpu.dimension_semantics<parallel>], iteration_bounds = array<i64: 1>, scalar_prefetch = 0 : i64, scratch_operands = 0 : i64, tpu.core_type = #tpu.core_type<tc>, window_params = [{transform_indices = @transform_0, window_bounds = array<i64: 3>}, {transform_indices = @transform_1, window_bounds = array<i64: 2, 4, 16>}, {transform_indices = @transform_2, window_bounds = array<i64: 2, 4, 16>}]} {
    %c0 = arith.constant 0 : index
    %c0_0 = arith.constant 0 : index
    %c0_1 = arith.constant 0 : index
    %0 = vector.load %arg2[%c0, %c0_0, %c0_1] : memref<2x4x16xf32, #tpu.memory_space<vmem>>, vector<2x4x16xf32>
    %cst = arith.constant dense<0.000000e+00> : vector<2x4xf32>
    %1 = vector.multi_reduction <add>, %0, %cst [2] : vector<2x4x16xf32> to vector<2x4xf32>
    %2 = vector.shape_cast %1 : vector<2x4xf32> to vector<2x4x1xf32>
    %cst_2 = arith.constant 6.250000e-02 : f32
    %3 = vector.broadcast %cst_2 : f32 to vector<2x4x1xf32>
    %4 = arith.mulf %2, %3 : vector<2x4x1xf32>
    %cst_3 = arith.constant 0.000000e+00 : f32
    %5 = vector.broadcast %cst_3 : f32 to vector<2x1x1xf32>
    %6 = vector.extract_strided_slice %4 {offsets = [0, 0, 0], sizes = [2, 3, 1], strides = [1, 1, 1]} : vector<2x4x1xf32> to vector<2x3x1xf32>
    %7 = tpu.concatenate %5, %6 in 1 : vector<2x1x1xf32>, vector<2x3x1xf32> -> vector<2x4x1xf32>
    %8 = vector.extract_strided_slice %4 {offsets = [0, 1, 0], sizes = [2, 3, 1], strides = [1, 1, 1]} : vector<2x4x1xf32> to vector<2x3x1xf32>
    %9 = tpu.concatenate %8, %5 in 1 : vector<2x3x1xf32>, vector<2x1x1xf32> -> vector<2x4x1xf32>
    %c0_4 = arith.constant 0 : index
    %10 = memref.load %arg1[%c0_4] : memref<3xf32, #tpu.memory_space<smem>>
    %11 = vector.broadcast %10 : f32 to vector<2x4x1xf32>
    %12 = arith.mulf %11, %7 : vector<2x4x1xf32>
    %c1 = arith.constant 1 : index
    %13 = memref.load %arg1[%c1] : memref<3xf32, #tpu.memory_space<smem>>
    %14 = vector.broadcast %13 : f32 to vector<2x4x1xf32>
    %15 = arith.mulf %14, %4 : vector<2x4x1xf32>
    %16 = arith.addf %12, %15 : vector<2x4x1xf32>
    %c2 = arith.constant 2 : index
    %17 = memref.load %arg1[%c2] : memref<3xf32, #tpu.memory_space<smem>>
    %18 = vector.broadcast %17 : f32 to vector<2x4x1xf32>
    %19 = arith.mulf %18, %9 : vector<2x4x1xf32>
    %20 = arith.addf %16, %19 : vector<2x4x1xf32>
    %21 = arith.negf %20 : vector<2x4x1xf32>
    %22 = math.exp %21 : vector<2x4x1xf32>
    %cst_5 = arith.constant 1.000000e+00 : f32
    %23 = vector.broadcast %cst_5 : f32 to vector<2x4x1xf32>
    %24 = arith.addf %23, %22 : vector<2x4x1xf32>
    %25 = arith.divf %23, %24 : vector<2x4x1xf32>
    %cst_6 = arith.constant 1.000000e+00 : f32
    %26 = vector.broadcast %cst_6 : f32 to vector<2x4x1xf32>
    %27 = arith.addf %26, %25 : vector<2x4x1xf32>
    %28 = vector.broadcast %27 : vector<2x4x1xf32> to vector<2x4x16xf32>
    %29 = arith.mulf %0, %28 : vector<2x4x16xf32>
    %c0_7 = arith.constant 0 : index
    %c0_8 = arith.constant 0 : index
    %c0_9 = arith.constant 0 : index
    %30 = vector.load %arg3[%c0_7, %c0_8, %c0_9] : memref<2x4x16xf32, #tpu.memory_space<vmem>>, vector<2x4x16xf32>
    tpu.vector_store %arg3[%c0_7, %c0_8, %c0_9], %29 {strides = array<i32>} : memref<2x4x16xf32, #tpu.memory_space<vmem>>, vector<2x4x16xf32>,
    return
  }
  func.func @transform_0(%arg0: i32) -> i32 {
    %c0_i32 = arith.constant 0 : i32
    %c0_i32_0 = arith.constant 0 : i32
    return %c0_i32 : i32
  }
  func.func @transform_1(%arg0: i32) -> (i32, i32, i32) {
    %c0_i32 = arith.constant 0 : i32
    %c0_i32_0 = arith.constant 0 : i32
    %c0_i32_1 = arith.constant 0 : i32
    return %arg0, %c0_i32, %c0_i32_0 : i32, i32, i32
  }
  func.func @transform_2(%arg0: i32) -> (i32, i32, i32) {
    %c0_i32 = arith.constant 0 : i32
    %c0_i32_0 = arith.constant 0 : i32
    %c0_i32_1 = arith.constant 0 : i32
    return %arg0, %c0_i32, %c0_i32_0 : i32, i32, i32
  }
}

module attributes {stable_mosaic.version = 11 : i64} {
  func.func @_gap_full_kernel(%arg0: i32, %arg1: memref<8x16xf32, #tpu.memory_space<vmem>>, %arg2: memref<8x1xf32, #tpu.memory_space<vmem>>) attributes {dimension_semantics = [#tpu.dimension_semantics<parallel>], iteration_bounds = array<i64: 1>, scalar_prefetch = 0 : i64, scratch_operands = 0 : i64, tpu.core_type = #tpu.core_type<tc>, window_params = [{transform_indices = @transform_0, window_bounds = array<i64: 8, 16>}, {transform_indices = @transform_1, window_bounds = array<i64: 8, 1>}]} {
    %c0 = arith.constant 0 : index
    %c0_0 = arith.constant 0 : index
    %0 = vector.load %arg1[%c0, %c0_0] : memref<8x16xf32, #tpu.memory_space<vmem>>, vector<8x16xf32>
    %cst = arith.constant dense<0.000000e+00> : vector<8xf32>
    %1 = vector.multi_reduction <add>, %0, %cst [1] : vector<8x16xf32> to vector<8xf32>
    %2 = vector.shape_cast %1 : vector<8xf32> to vector<8x1xf32>
    %cst_1 = arith.constant 6.250000e-02 : f32
    %3 = vector.broadcast %cst_1 : f32 to vector<8x1xf32>
    %4 = arith.mulf %2, %3 : vector<8x1xf32>
    %c0_2 = arith.constant 0 : index
    %c0_3 = arith.constant 0 : index
    %5 = vector.load %arg2[%c0_2, %c0_3] : memref<8x1xf32, #tpu.memory_space<vmem>>, vector<8x1xf32>
    tpu.vector_store %arg2[%c0_2, %c0_3], %4 {strides = array<i32>} : memref<8x1xf32, #tpu.memory_space<vmem>>, vector<8x1xf32>,
    return
  }
  func.func @transform_0(%arg0: i32) -> (i32, i32) {
    %c0_i32 = arith.constant 0 : i32
    %c0_i32_0 = arith.constant 0 : i32
    return %arg0, %c0_i32 : i32, i32
  }
  func.func @transform_1(%arg0: i32) -> (i32, i32) {
    %c0_i32 = arith.constant 0 : i32
    %c0_i32_0 = arith.constant 0 : i32
    return %arg0, %c0_i32 : i32, i32
  }
}

</mosaic_0001>

<llo_original>
// kernel: tpu_custom_call.1
$region0: #{tpu_custom_call.1}
  #allocation0 [shape = 'u32[]', space=smem, size = 0x4, offset = 0x4, fixed_abs, tag = 'smem constant byte address 0x4 - core index']
  #allocation1 [shape = 'u32[144,128]{1,0:T(1,128)}', space=vmem, size = 0x12000, scoped, tag = 'internal scratch']
  %s0 = inlined_call_operand.hbm [shape: f32[3], index: 0, kind: input, shape index: {}]
  %s1 = inlined_call_operand.hbm [shape: f32[2,4,16], index: 1, kind: input, shape index: {}]
  %s2 = inlined_call_operand.hbm [shape: f32[2,4,16], index: 2, kind: output, shape index: {}]
  %s3 = sld [smem:[#allocation0]]
  $region26: #{tpu_custom_call.1} parent=0
    _
  %s5 = ssub.s32 1, %s3
  %s6 = scalar_select 0, %s5, %s3
  $region1: #{tpu_custom_call.1} parent=0
    #allocation2 [shape = 'u8[512]{0}', space=smem, size = 0x200, scoped, tag = 'input window, operand 0, single buffered']
    #allocation3 [shape = 's32[1]{0}', space=sflag, size = 0x4, scoped, tag = 'scoped memory for tpu_custom_call.1']
    #allocation4 [shape = 's32[1]{0}', space=sflag, size = 0x4, scoped, tag = 'scoped memory for tpu_custom_call.1']
    #allocation5 [shape = 's32[1]{0}', space=sflag, size = 0x4, scoped, tag = 'scoped memory for tpu_custom_call.1']
    #allocation6 [shape = 'u8[4096]{0}', space=vmem, size = 0x1000, scoped, tag = 'input window, operand 1, single buffered']
    #allocation7 [shape = 'u8[4096]{0}', space=vmem, size = 0x1000, scoped, tag = 'output window, operand 0, single buffered']
    %7 = vsyncpa [#allocation5], 0
    %8 = vsyncpa [#allocation3], 0
    %9 = vsyncpa [#allocation4], 0
    // Predicated region
    $region2: #{tpu_custom_call.1} parent=1 // pred_check
      _
    $region3: #{tpu_custom_call.1} parent=1 // pred_check_branch
      %11 = sbr.rel (0) target = $region5
    $region4: #{tpu_custom_call.1} parent=1 // pred_region
      %s13 = ssub.s32 16, 16
      %14 = vsyncadd [#allocation5], %s13
      %17 = dma.hbm_to_smem %s0, 16, [#allocation2], [#allocation5]
    $region5: #{tpu_custom_call.1} parent=1 // pred_fallthru
      _
    // Predicated region
    $region6: #{tpu_custom_call.1} parent=1 // pred_check
      _
    $region7: #{tpu_custom_call.1} parent=1 // pred_check_branch
      %19 = sbr.rel (0) target = $region9
    $region8: #{tpu_custom_call.1} parent=1 // pred_region
      %s21 = ssub.s32 128, 128
      %22 = vsyncadd [#allocation3], %s21
      %s23 = sshll.u32 [#allocation6], 4
      %s24 = int_to_ptr.vmem [resolvable:$true] %s23
      %29 = dma.hbm_to_vmem [thread:$0]  %s1, 128, %s24, [#allocation3], 64, 64, 4
    $region9: #{tpu_custom_call.1} parent=1 // pred_fallthru
      _
    // Predicated region
    $region10: #{tpu_custom_call.1} parent=1 // pred_check
      _
    $region11: #{tpu_custom_call.1} parent=1 // pred_check_branch
      %31 = sbr.rel (0) target = $region13
    $region12: #{tpu_custom_call.1} parent=1 // pred_region
      %32 = dma.done [#allocation5], 16
    $region13: #{tpu_custom_call.1} parent=1 // pred_fallthru
      _
    // Predicated region
    $region14: #{tpu_custom_call.1} parent=1 // pred_check
      _
    $region15: #{tpu_custom_call.1} parent=1 // pred_check_branch
      %34 = sbr.rel (0) target = $region17
    $region16: #{tpu_custom_call.1} parent=1 // pred_region
      %35 = dma.done [#allocation3], 128
    $region17: #{tpu_custom_call.1} parent=1 // pred_fallthru
      _
    %36 = sfence
    %v37 = vld [vmem:[#allocation6] sm:$0xf]
    %v38 = vld [vmem:[#allocation6 + $0x4] sm:$0xf]
    %vm39 = vcmask 125952
    %v40 = vsel %vm39, %v37, 0.0
    %41 = vadd.xlane.f32.xlu0 %v40
    %v42 = vpop.xlane.xlu0 %41
    %v43 = vsel %vm39, %v38, 0.0
    %44 = vadd.xlane.f32.xlu0 %v43
    %v45 = vpop.xlane.xlu0 %44
    %v46 = vmul.f32 %v42, 0.0625
    %v47 = vmul.f32 %v45, 0.0625
    %v50 = vrot.slane %v46, 7
    %v51 = vrot.slane %v47, 7
    %vm54 = vcmask 1040384
    %v55 = vsel %vm54, 0.0, %v50
    %v56 = vsel %vm54, 0.0, %v51
    %v57 = vrot.slane %v46, 1
    %v58 = vrot.slane %v47, 1
    %vm61 = vcmask 1042432
    %v62 = vsel %vm61, %v57, 0.0
    %v63 = vsel %vm61, %v58, 0.0
    %s64 = sld [smem:[#allocation2]]
    %v65 = vstv %s64
    %v66 = vmul.f32 %v65, %v55
    %v67 = vmul.f32 %v65, %v56
    %s68 = sld [smem:[#allocation2 + $0x1]]
    %v69 = vstv %s68
    %v70 = vmul.f32 %v69, %v46
    %v71 = vmul.f32 %v69, %v47
    %v72 = vadd.f32 %v66, %v70
    %v73 = vadd.f32 %v67, %v71
    %s74 = sld [smem:[#allocation2 + $0x2]]
    %v75 = vstv %s74
    %v76 = vmul.f32 %v75, %v62
    %v77 = vmul.f32 %v75, %v63
    %v78 = vadd.f32 %v72, %v76
    %v79 = vadd.f32 %v73, %v77
    %v80 = vxor.u32 %v78, 2147483648
    %v81 = vxor.u32 %v79, 2147483648
    %v82 = vmul.f32 %v80, 1.442695
    %v83 = vpow.pop %v82
    %v84 = vmul.f32 %v81, 1.442695
    %v85 = vpow.pop %v84
    %v86 = vadd.f32 %v83, 1.0
    %v87 = vadd.f32 %v85, 1.0
    %v88 = vrcp.pop %v86
    %v89 = vmul.f32 1.0, %v88
    %v90 = vrcp.pop %v87
    %v91 = vmul.f32 1.0, %v90
    %v92 = vadd.f32 %v89, 1.0
    %v93 = vadd.f32 %v91, 1.0
    %95 = vset.pattern.permute.xlu0 0
    %96 = vperm.xlu0 %95, %v92
    %v97 = vpop.permute.xlu0 %96
    %100 = vset.pattern.permute.xlu0 0
    %101 = vperm.xlu0 %100, %v93
    %v102 = vpop.permute.xlu0 %101
    %v104 = vmul.f32 %v37, %v97
    %v105 = vmul.f32 %v38, %v102
    %106 = vst.msk [vmem:[#allocation7] sm:$0xf] %vm39, %v104
    %107 = vst.msk [vmem:[#allocation7 + $0x4] sm:$0xf] %vm39, %v105
    // Predicated region
    $region18: #{tpu_custom_call.1} parent=1 // pred_check
      _
    $region19: #{tpu_custom_call.1} parent=1 // pred_check_branch
      %109 = sbr.rel (0) target = $region21
    $region20: #{tpu_custom_call.1} parent=1 // pred_region
      %s111 = ssub.s32 128, 128
      %112 = vsyncadd [#allocation4], %s111
      %s113 = sshll.u32 [#allocation7], 4
      %s114 = int_to_ptr.vmem [resolvable:$true] %s113
      %119 = dma.vmem_to_hbm [thread:$0]  %s114, 128, %s2, [#allocation4], 64, 64, 4
    $region21: #{tpu_custom_call.1} parent=1 // pred_fallthru
      _
    // Predicated region
    $region22: #{tpu_custom_call.1} parent=1 // pred_check
      _
    $region23: #{tpu_custom_call.1} parent=1 // pred_check_branch
      %121 = sbr.rel (0) target = $region25
    $region24: #{tpu_custom_call.1} parent=1 // pred_region
      %122 = dma.done [#allocation4], 128
    $region25: #{tpu_custom_call.1} parent=1 // pred_fallthru
      _
    %123 = vsyncpa [#allocation3], 1
    %124 = vsyncpa [#allocation4], 1
    %125 = vsyncpa [#allocation5], 1

// kernel: tpu_custom_call.1
$region0: #{tpu_custom_call.1}
  #allocation0 [shape = 'u32[]', space=smem, size = 0x4, offset = 0x4, fixed_abs, tag = 'smem constant byte address 0x4 - core index']
  #allocation1 [shape = 'u32[144,128]{1,0:T(1,128)}', space=vmem, size = 0x12000, scoped, tag = 'internal scratch']
  %s0 = inlined_call_operand.hbm [shape: f32[8,16], index: 0, kind: input, shape index: {}]
  %s1 = inlined_call_operand.vmem [shape: f32[8,1], index: 1, kind: output, shape index: {}]
  %s2 = sld [smem:[#allocation0]]
  $region18: #{tpu_custom_call.1} parent=0
    _
  %s4 = ssub.s32 1, %s2
  %s5 = scalar_select 0, %s4, %s2
  $region1: #{tpu_custom_call.1} parent=0
    #allocation2 [shape = 'u8[4096]{0}', space=vmem, size = 0x1000, scoped, tag = 'input window, operand 0, single buffered']
    #allocation3 [shape = 's32[1]{0}', space=sflag, size = 0x4, scoped, tag = 'scoped memory for tpu_custom_call.1']
    %6 = vsyncpa [#allocation3], 0
    // Predicated region
    $region2: #{tpu_custom_call.1} parent=1 // pred_check
      _
    $region3: #{tpu_custom_call.1} parent=1 // pred_check_branch
      %8 = sbr.rel (0) target = $region5
    $region4: #{tpu_custom_call.1} parent=1 // pred_region
      %s10 = ssub.s32 128, 128
      %11 = vsyncadd [#allocation3], %s10
      %s13 = sshll.u32 [#allocation2], 4
      %s14 = int_to_ptr.vmem [resolvable:$true] %s13
      %16 = dma.hbm_to_vmem [thread:$0]  %s0, 128, %s14, [#allocation3]
    $region5: #{tpu_custom_call.1} parent=1 // pred_fallthru
      _
    // Predicated region
    $region6: #{tpu_custom_call.1} parent=1 // pred_check
      _
    $region7: #{tpu_custom_call.1} parent=1 // pred_check_branch
      %18 = sbr.rel (0) target = $region9
    $region8: #{tpu_custom_call.1} parent=1 // pred_region
      %19 = dma.done [#allocation3], 128
    $region9: #{tpu_custom_call.1} parent=1 // pred_fallthru
      _
    %v20 = vld [vmem:[#allocation2] sm:$0xff]
    %vm21 = vcmask 130048
    %v22 = vsel %vm21, %v20, 0.0
    %23 = vadd.xlane.f32.xlu0 %v22
    %v24 = vpop.xlane.xlu0 %23
    %v25 = vmul.f32 %v24, 0.0625
    %vm26 = vcmask 7168
    %27 = vst.msk [vmem:[%s1] sm:$0xff] %vm26, %v25
    // Predicated region
    $region10: #{tpu_custom_call.1} parent=1 // pred_check
      _
    $region11: #{tpu_custom_call.1} parent=1 // pred_check_branch
      %29 = sbr.rel (0) target = $region13
    $region12: #{tpu_custom_call.1} parent=1 // pred_region
      _
    $region13: #{tpu_custom_call.1} parent=1 // pred_fallthru
      _
    // Predicated region
    $region14: #{tpu_custom_call.1} parent=1 // pred_check
      _
    $region15: #{tpu_custom_call.1} parent=1 // pred_check_branch
      %31 = sbr.rel (0) target = $region17
    $region16: #{tpu_custom_call.1} parent=1 // pred_region
      _
    $region17: #{tpu_custom_call.1} parent=1 // pred_fallthru
      _
    %32 = vsyncpa [#allocation3], 1

</llo_original>
